<compile_context>
chip_gen: v5e
topology: v5e:2x2
jax: 0.10.0
libtpu: 0.0.40
codegen_flags: <defaults>
</compile_context>

<pallas_src>
import functools

import jax
import jax.numpy as jnp
from jax import lax
from jax.experimental import pallas as pl
from jax.experimental.pallas import tpu as pltpu


def _round_up(n: int, m: int) -> int:
    return ((n + m - 1) // m) * m


def _pick_tile(total: int, pref: int, step: int = 8) -> int:
    """Largest tile <= pref that is a multiple of `step` and divides `total`
    (falls back to `total`, so no large padding is ever required)."""
    t = min(pref, total)
    t = max(step, (t // step) * step)
    while t > step and total % t:
        t -= step
    if total % t:
        t = total
    return t


def _pick_head_group(nh: int, hd: int, target_cols: int) -> int:
    """Heads per W_q column slab: largest divisor g of nh with g*hd lane-aligned
    (multiple of 128) and <= target_cols; otherwise all heads (full-dim block)."""
    best = None
    for g in range(1, nh + 1):
        if nh % g:
            continue
        cols = g * hd
        if cols % 128 == 0 and cols <= max(target_cols, 128):
            best = g
    return best if best is not None else nh


def _clamp_vmem(est_bytes: int) -> int:
    # Clamp the scoped VMEM request against the real chip capacity with headroom
    # (v5e/v6e 128 MiB -> ~108 MiB usable, v7x 64 MiB -> ~54 MiB); safe fallback
    # of 56 MiB works on every generation.
    cap = 56 << 20
    try:
        cap = int(pltpu.get_tpu_info().vmem_capacity_bytes * 0.85)
    except Exception:
        cap = 56 << 20
    return int(min(max(int(1.5 * est_bytes) + (4 << 20), 16 << 20), cap))


def _gelu_tanh(x):
    # gelu_pytorch_tanh: 0.5*x*(1 + tanh(sqrt(2/pi)*(x + 0.044715*x^3)))
    c = 0.7978845608028654  # sqrt(2/pi)
    return 0.5 * x * (1.0 + jnp.tanh(c * (x + 0.044715 * x * x * x)))


def _layernorm_f32(x, gamma, beta, eps):
    mu = jnp.mean(x, axis=-1, keepdims=True)
    xc = x - mu
    var = jnp.mean(xc * xc, axis=-1, keepdims=True)
    return xc * lax.rsqrt(var + eps) * gamma + beta


# ---------------------------------------------------------------------------
# Kernel A: LN1 + Q projection (column-tiled by head group) + KV projection
# ---------------------------------------------------------------------------
def _ln1_qkv_kernel(x_ref, g1_ref, b1_ref, wq_ref, bq_ref, wkv_ref, bkv_ref,
                    q_ref, k_ref, v_ref, xn_sc,
                    *, head_dim, heads_per_blk, scale, eps):
    j = pl.program_id(1)

    @pl.when(j == 0)
    def _():
        x = x_ref[...].astype(jnp.float32)
        xn = _layernorm_f32(x, g1_ref[...].astype(jnp.float32),
                            b1_ref[...].astype(jnp.float32), eps)
        xn_cast = xn.astype(xn_sc.dtype)
        xn_sc[...] = xn_cast                     # reused by all head-group steps
        # KV projection (tiny for MQA): only once per token tile.
        kv = jnp.dot(xn_cast, wkv_ref[...], preferred_element_type=jnp.float32)
        kv = kv + bkv_ref[...].astype(jnp.float32)
        k_ref[...] = kv[:, :head_dim].astype(k_ref.dtype)
        v_ref[...] = kv[:, head_dim:].astype(v_ref.dtype)

    # Q projection for this head group; scale folded into q here (one (tm, cols)
    # multiply instead of per-score-tile scaling inside attention).
    q = jnp.dot(xn_sc[...], wq_ref[...], preferred_element_type=jnp.float32)
    q = (q + bq_ref[...].astype(jnp.float32)) * scale
    for hh in range(heads_per_blk):
        q_ref[hh] = q[:, hh * head_dim:(hh + 1) * head_dim].astype(q_ref.dtype)


def _ln1_qkv(x2, params, *, num_heads, head_dim, eps, tm, q_cols):
    M, H = x2.shape
    dt = x2.dtype
    Mp = _round_up(M, 8)
    if Mp != M:                                   # at most 7 padded rows
        x2 = jnp.pad(x2, ((0, Mp - M), (0, 0)))
    tm_eff = _pick_tile(Mp, tm)

    hg = _pick_head_group(num_heads, head_dim, q_cols)
    qc = hg * head_dim

    g1 = params["ln1_g"].reshape(1, H)
    b1 = params["ln1_b"].reshape(1, H)
    bq = params["b_q"].reshape(1, H)
    bkv = params["b_kv"].reshape(1, 2 * head_dim)

    kernel = functools.partial(
        _ln1_qkv_kernel, head_dim=head_dim, heads_per_blk=hg,
        scale=float(head_dim) ** -0.5, eps=float(eps))

    asz = jnp.dtype(dt).itemsize
    wsz = jnp.dtype(params["w_q"].dtype).itemsize
    est = (2 * tm_eff * H * asz
           + 2 * (H * qc + qc) * wsz
           + (H * 2 * head_dim + 2 * head_dim) * wsz
           + 2 * hg * tm_eff * head_dim * asz
           + 4 * tm_eff * head_dim * asz
           + tm_eff * H * asz)

    q_heads, k, v = pl.pallas_call(
        kernel,
        out_shape=(jax.ShapeDtypeStruct((num_heads, Mp, head_dim), dt),
                   jax.ShapeDtypeStruct((Mp, head_dim), dt),
                   jax.ShapeDtypeStruct((Mp, head_dim), dt)),
        grid_spec=pltpu.PrefetchScalarGridSpec(
            num_scalar_prefetch=0,
            grid=(Mp // tm_eff, num_heads // hg),
            in_specs=[
                pl.BlockSpec((tm_eff, H), lambda i, j: (i, 0)),          # x tile
                pl.BlockSpec((1, H), lambda i, j: (0, 0)),               # ln1 gamma
                pl.BlockSpec((1, H), lambda i, j: (0, 0)),               # ln1 beta
                pl.BlockSpec((H, qc), lambda i, j: (0, j)),              # w_q cols
                pl.BlockSpec((1, qc), lambda i, j: (0, j)),              # b_q cols
                pl.BlockSpec((H, 2 * head_dim), lambda i, j: (0, 0)),    # w_kv
                pl.BlockSpec((1, 2 * head_dim), lambda i, j: (0, 0)),    # b_kv
            ],
            out_specs=[
                pl.BlockSpec((hg, tm_eff, head_dim), lambda i, j: (j, i, 0)),
                pl.BlockSpec((tm_eff, head_dim), lambda i, j: (i, 0)),
                pl.BlockSpec((tm_eff, head_dim), lambda i, j: (i, 0)),
            ],
            scratch_shapes=[pltpu.VMEM((tm_eff, H), dt)],
        ),
        compiler_params=pltpu.CompilerParams(
            dimension_semantics=("parallel", "arbitrary"),
            vmem_limit_bytes=_clamp_vmem(est)),
    )(x2, g1, b1, params["w_q"], bq, params["w_kv"], bkv)
    return q_heads[:, :M], k[:M], v[:M]


# ---------------------------------------------------------------------------
# Kernel B: flash-style causal MQA + fused c_proj + bias + residual -> r2
# ---------------------------------------------------------------------------
def _flash_cproj_kernel(q_ref, k_ref, v_ref, wo_ref, bo_ref, x_ref, o_ref,
                        m_sc, l_sc, acc_sc, out_sc, *, tq, tk):
    qi = pl.program_id(1)
    h = pl.program_id(2)
    ki = pl.program_id(3)
    n_h = pl.num_programs(2)
    n_k = pl.num_programs(3)

    @pl.when((h == 0) & (ki == 0))
    def _():
        out_sc[...] = jnp.zeros_like(out_sc)      # f32 c_proj accumulator (tq, H)

    @pl.when(ki == 0)
    def _():
        m_sc[...] = jnp.full_like(m_sc, -jnp.inf)
        l_sc[...] = jnp.zeros_like(l_sc)
        acc_sc[...] = jnp.zeros_like(acc_sc)

    q_start = qi * tq
    k_start = ki * tk

    # Skip kv tiles strictly above the causal diagonal (~2x fewer score matmuls).
    @pl.when(k_start < q_start + tq)
    def _():
        q = q_ref[0, 0]                            # (tq, hd), scale already folded
        k = k_ref[0]                               # (tk, hd)
        s = lax.dot_general(q, k, (((1,), (1,)), ((), ())),
                            preferred_element_type=jnp.float32)   # (tq, tk)
        qpos = q_start + lax.broadcasted_iota(jnp.int32, (tq, tk), 0)
        kpos = k_start + lax.broadcasted_iota(jnp.int32, (tq, tk), 1)
        s = jnp.where(qpos >= kpos, s, -1e30)

        m_prev = m_sc[...]
        m_new = jnp.maximum(m_prev, jnp.max(s, axis=-1, keepdims=True))
        alpha = jnp.exp(m_prev - m_new)
        p = jnp.exp(s - m_new)
        l_sc[...] = alpha * l_sc[...] + jnp.sum(p, axis=-1, keepdims=True)
        acc_sc[...] = alpha * acc_sc[...] + jnp.dot(
            p.astype(v_ref.dtype), v_ref[0], preferred_element_type=jnp.float32)
        m_sc[...] = m_new

    @pl.when(ki == n_k - 1)
    def _():
        # Flash epilogue for this head: normalize (EUP reciprocal + one Newton
        # step, no divide) and fold straight into c_proj via this head's W_o slab.
        inv_l = pl.reciprocal(l_sc[...], approx=True)
        inv_l = inv_l * (2.0 - l_sc[...] * inv_l)
        attn_h = acc_sc[...] * inv_l               # (tq, hd) f32
        out_sc[...] += jnp.dot(attn_h.astype(wo_ref.dtype), wo_ref[...],
                               preferred_element_type=jnp.float32)

    @pl.when((ki == n_k - 1) & (h == n_h - 1))
    def _():
        r2 = (x_ref[0].astype(jnp.float32) + out_sc[...]
              + bo_ref[...].astype(jnp.float32))
        o_ref[0] = r2.astype(o_ref.dtype)


def _flash_attn_cproj(x, q4, k3, v3, params, *, num_heads, head_dim, tq, tk):
    B, S, H = x.shape
    dt = x.dtype
    tq_eff = _pick_tile(S, tq)
    tk_eff = _pick_tile(S, tk)

    bo = params["b_o"].reshape(1, H)
    kernel = functools.partial(_flash_cproj_kernel, tq=tq_eff, tk=tk_eff)

    asz = jnp.dtype(dt).itemsize
    wsz = jnp.dtype(params["w_o"].dtype).itemsize
    est = (2 * tq_eff * head_dim * asz + 4 * tk_eff * head_dim * asz
           + 2 * (head_dim * H + H) * wsz
           + 2 * tq_eff * H * asz            # residual x tile
           + 2 * tq_eff * H * asz            # r2 output tile
           + tq_eff * (2 + head_dim + H) * 4)  # f32 scratches

    r2 = pl.pallas_call(
        kernel,
        out_shape=jax.ShapeDtypeStruct((B, S, H), dt),
        grid_spec=pltpu.PrefetchScalarGridSpec(
            num_scalar_prefetch=0,
            grid=(B, S // tq_eff, num_heads, S // tk_eff),
            in_specs=[
                pl.BlockSpec((1, 1, tq_eff, head_dim),
                             lambda b, qi, h, ki: (h, b, qi, 0)),        # q
                pl.BlockSpec((1, tk_eff, head_dim),
                             lambda b, qi, h, ki: (b, ki, 0)),           # k
                pl.BlockSpec((1, tk_eff, head_dim),
                             lambda b, qi, h, ki: (b, ki, 0)),           # v
                pl.BlockSpec((head_dim, H), lambda b, qi, h, ki: (h, 0)),  # W_o slab
                pl.BlockSpec((1, H), lambda b, qi, h, ki: (0, 0)),       # b_o
                pl.BlockSpec((1, tq_eff, H), lambda b, qi, h, ki: (b, qi, 0)),  # residual
            ],
            out_specs=pl.BlockSpec((1, tq_eff, H),
                                   lambda b, qi, h, ki: (b, qi, 0)),
            scratch_shapes=[
                pltpu.VMEM((tq_eff, 1), jnp.float32),          # m
                pltpu.VMEM((tq_eff, 1), jnp.float32),          # l
                pltpu.VMEM((tq_eff, head_dim), jnp.float32),   # per-head acc
                pltpu.VMEM((tq_eff, H), jnp.float32),          # c_proj acc
            ],
        ),
        compiler_params=pltpu.CompilerParams(
            dimension_semantics=("parallel", "parallel", "arbitrary", "arbitrary"),
            vmem_limit_bytes=_clamp_vmem(est)),
    )(q4, k3, v3, params["w_o"], bo, x)
    return r2


# ---------------------------------------------------------------------------
# Kernel C: LN2 fused into the MLP (+ residual), tiled over (token, intermediate)
# ---------------------------------------------------------------------------
def _ln2_mlp_kernel(r_ref, g2_ref, b2_ref, w1_ref, bfc_ref, w2_ref, bproj_ref,
                    o_ref, n2_sc, acc_ref, *, eps):
    k = pl.program_id(1)

    @pl.when(k == 0)
    def _():
        r = r_ref[...].astype(jnp.float32)
        n2 = _layernorm_f32(r, g2_ref[...].astype(jnp.float32),
                            b2_ref[...].astype(jnp.float32), eps)
        n2_sc[...] = n2.astype(n2_sc.dtype)        # LN2 kept resident; never hits HBM
        acc_ref[...] = jnp.zeros_like(acc_ref)

    hmid = jnp.dot(n2_sc[...], w1_ref[...], preferred_element_type=jnp.float32)
    hmid = _gelu_tanh(hmid + bfc_ref[...].astype(jnp.float32))
    acc_ref[...] += jnp.dot(hmid.astype(w2_ref.dtype), w2_ref[...],
                            preferred_element_type=jnp.float32)

    @pl.when(k == pl.num_programs(1) - 1)
    def _():
        o_ref[...] = (r_ref[...].astype(jnp.float32) + acc_ref[...]
                      + bproj_ref[...].astype(jnp.float32)).astype(o_ref.dtype)


def _ln2_mlp(r2, params, *, eps, tm, ti):
    M, H = r2.shape
    dt = r2.dtype
    I = params["w_fc"].shape[1]
    Mp = _round_up(M, 8)
    if Mp != M:
        r2 = jnp.pad(r2, ((0, Mp - M), (0, 0)))
    tm_eff = _pick_tile(Mp, tm)
    ti_eff = _pick_tile(I, ti, step=128)

    g2 = params["ln2_g"].reshape(1, H)
    b2 = params["ln2_b"].reshape(1, H)
    bfc = params["b_fc"].reshape(1, I)
    bproj = params["b_proj"].reshape(1, H)

    asz = jnp.dtype(dt).itemsize
    wsz = jnp.dtype(params["w_fc"].dtype).itemsize
    est = (2 * tm_eff * H * asz
           + 2 * (H * ti_eff + ti_eff) * wsz
           + 2 * (ti_eff * H + H) * wsz
           + 2 * tm_eff * H * asz
           + tm_eff * H * asz
           + tm_eff * H * 4)

    out = pl.pallas_call(
        functools.partial(_ln2_mlp_kernel, eps=float(eps)),
        out_shape=jax.ShapeDtypeStruct((Mp, H), dt),
        grid_spec=pltpu.PrefetchScalarGridSpec(
            num_scalar_prefetch=0,
            grid=(Mp // tm_eff, I // ti_eff),
            in_specs=[
                pl.BlockSpec((tm_eff, H), lambda i, k: (i, 0)),     # r2 tile
                pl.BlockSpec((1, H), lambda i, k: (0, 0)),          # ln2 gamma
                pl.BlockSpec((1, H), lambda i, k: (0, 0)),          # ln2 beta
                pl.BlockSpec((H, ti_eff), lambda i, k: (0, k)),     # w_fc cols
                pl.BlockSpec((1, ti_eff), lambda i, k: (0, k)),     # b_fc
                pl.BlockSpec((ti_eff, H), lambda i, k: (k, 0)),     # w_proj rows
                pl.BlockSpec((1, H), lambda i, k: (0, 0)),          # b_proj
            ],
            out_specs=pl.BlockSpec((tm_eff, H), lambda i, k: (i, 0)),
            scratch_shapes=[pltpu.VMEM((tm_eff, H), dt),
                            pltpu.VMEM((tm_eff, H), jnp.float32)],
        ),
        compiler_params=pltpu.CompilerParams(
            dimension_semantics=("parallel", "arbitrary"),
            vmem_limit_bytes=_clamp_vmem(est)),
    )(r2, g2, b2, params["w_fc"], bfc, params["w_proj"], bproj)
    return out[:M]


# ---------------------------------------------------------------------------
# Full block
# ---------------------------------------------------------------------------
def gpt_bigcode_block(hidden_states, params, *, num_heads, eps=1e-5,
                      tq=512, tk=512, tm=256, ti=512, q_cols=512):
    B, S, H = hidden_states.shape
    assert H % num_heads == 0
    head_dim = H // num_heads
    M = B * S

    x2 = hidden_states.reshape(M, H)
    q_heads, k, v = _ln1_qkv(x2, params, num_heads=num_heads, head_dim=head_dim,
                             eps=eps, tm=tm, q_cols=q_cols)
    q4 = q_heads.reshape(num_heads, B, S, head_dim)
    k3 = k.reshape(B, S, head_dim)
    v3 = v.reshape(B, S, head_dim)

    r2 = _flash_attn_cproj(hidden_states, q4, k3, v3, params,
                           num_heads=num_heads, head_dim=head_dim, tq=tq, tk=tk)
    out = _ln2_mlp(r2.reshape(M, H), params, eps=eps, tm=tm, ti=ti)
    return out.reshape(B, S, H)


# ---------------------------------------------------------------------------
# Pure-JAX reference
# ---------------------------------------------------------------------------
def _reference_block(x, p, *, num_heads, eps):
    B, S, H = x.shape
    hd = H // num_heads
    xf = x.astype(jnp.float32)

    def ln(z, g, b):
        mu = z.mean(-1, keepdims=True)
        var = ((z - mu) ** 2).mean(-1, keepdims=True)
        return (z - mu) / jnp.sqrt(var + eps) * g + b

    xn = ln(xf, p["ln1_g"], p["ln1_b"])
    q = xn @ p["w_q"] + p["b_q"]
    kv = xn @ p["w_kv"] + p["b_kv"]
    k, v = kv[..., :hd], kv[..., hd:]
    q4 = q.reshape(B, S, num_heads, hd)
    scores = jnp.einsum("bqnd,bkd->bnqk", q4, k) * (hd ** -0.5)
    causal = jnp.tril(jnp.ones((S, S), dtype=bool))
    scores = jnp.where(causal[None, None], scores, -1e30)
    probs = jax.nn.softmax(scores, axis=-1)
    attn = jnp.einsum("bnqk,bkd->bqnd", probs, v).reshape(B, S, H)
    attn = attn @ p["w_o"] + p["b_o"]
    r2 = xf + attn
    n2 = ln(r2, p["ln2_g"], p["ln2_b"])
    h = _gelu_tanh(n2 @ p["w_fc"] + p["b_fc"])
    y = h @ p["w_proj"] + p["b_proj"]
    return (r2 + y).astype(x.dtype)


if __name__ == "__main__":
    batch, seq, hidden, num_heads = 2, 8, 32, 4
    intermediate = 4 * hidden          # GPT-BigCode default n_inner = 4 * hidden
    head_dim = hidden // num_heads
    eps = 1e-5

    key = jax.random.PRNGKey(0)
    keys = jax.random.split(key, 15)

    def w(kk, shape, scale=0.02):
        return jax.random.normal(kk, shape, dtype=jnp.float32) * scale

    x = jax.random.normal(keys[0], (batch, seq, hidden), dtype=jnp.float32)
    params = dict(
        ln1_g=1.0 + w(keys[1], (hidden,)),
        ln1_b=w(keys[2], (hidden,)),
        w_q=w(keys[3], (hidden, hidden)),
        b_q=w(keys[4], (hidden,)),
        w_kv=w(keys[5], (hidden, 2 * head_dim)),
        b_kv=w(keys[6], (2 * head_dim,)),
        w_o=w(keys[7], (hidden, hidden)),
        b_o=w(keys[8], (hidden,)),
        ln2_g=1.0 + w(keys[9], (hidden,)),
        ln2_b=w(keys[10], (hidden,)),
        w_fc=w(keys[11], (hidden, intermediate)),
        b_fc=w(keys[12], (intermediate,)),
        w_proj=w(keys[13], (intermediate, hidden)),
        b_proj=w(keys[14], (hidden,)),
    )

    y = gpt_bigcode_block(x, params, num_heads=num_heads, eps=eps)
    y = jax.block_until_ready(y)

    y_ref = _reference_block(x, params, num_heads=num_heads, eps=eps)
    assert y.shape == x.shape
    max_err = float(jnp.max(jnp.abs(y - y_ref)))
    assert jnp.allclose(y, y_ref, atol=5e-4, rtol=5e-4), (
        f"mismatch vs reference, max_err={max_err}")

    print("KERNEL_OK")
</pallas_src>

<mosaic_0001>
module attributes {stable_mosaic.version = 11 : i64} {
  func.func @_ln1_qkv_kernel(%arg0: i32, %arg1: i32, %arg2: memref<16x32xf32, #tpu.memory_space<vmem>>, %arg3: memref<1x32xf32, #tpu.memory_space<vmem>>, %arg4: memref<1x32xf32, #tpu.memory_space<vmem>>, %arg5: memref<32x32xf32, #tpu.memory_space<vmem>>, %arg6: memref<1x32xf32, #tpu.memory_space<vmem>>, %arg7: memref<32x16xf32, #tpu.memory_space<vmem>>, %arg8: memref<1x16xf32, #tpu.memory_space<vmem>>, %arg9: memref<4x16x8xf32, #tpu.memory_space<vmem>>, %arg10: memref<16x8xf32, #tpu.memory_space<vmem>>, %arg11: memref<16x8xf32, #tpu.memory_space<vmem>>, %arg12: memref<16x32xf32, #tpu.memory_space<vmem>>) attributes {dimension_semantics = [#tpu.dimension_semantics<parallel>, #tpu.dimension_semantics<arbitrary>], iteration_bounds = array<i64: 1, 1>, scalar_prefetch = 0 : i64, scratch_operands = 1 : i64, tpu.core_type = #tpu.core_type<tc>, window_params = [{transform_indices = @transform_0, window_bounds = array<i64: 16, 32>}, {pipeline_mode = #tpu.pipeline_mode<synchronous>, transform_indices = @transform_1, window_bounds = array<i64: 1, 32>}, {pipeline_mode = #tpu.pipeline_mode<synchronous>, transform_indices = @transform_2, window_bounds = array<i64: 1, 32>}, {transform_indices = @transform_3, window_bounds = array<i64: 32, 32>}, {transform_indices = @transform_4, window_bounds = array<i64: 1, 32>}, {pipeline_mode = #tpu.pipeline_mode<synchronous>, transform_indices = @transform_5, window_bounds = array<i64: 32, 16>}, {pipeline_mode = #tpu.pipeline_mode<synchronous>, transform_indices = @transform_6, window_bounds = array<i64: 1, 16>}, {transform_indices = @transform_7, window_bounds = array<i64: 4, 16, 8>}, {transform_indices = @transform_8, window_bounds = array<i64: 16, 8>}, {transform_indices = @transform_9, window_bounds = array<i64: 16, 8>}]} {
    %c0_i32 = arith.constant 0 : i32
    %0 = arith.cmpi eq, %arg1, %c0_i32 : i32
    %1 = arith.extui %0 : i1 to i32
    %c0_i32_0 = arith.constant 0 : i32
    %2 = arith.cmpi ne, %1, %c0_i32_0 : i32
    scf.if %2 {
      %c0_16 = arith.constant 0 : index
      %c0_17 = arith.constant 0 : index
      %27 = vector.load %arg2[%c0_16, %c0_17] : memref<16x32xf32, #tpu.memory_space<vmem>>, vector<16x32xf32>
      %c0_18 = arith.constant 0 : index
      %c0_19 = arith.constant 0 : index
      %28 = vector.load %arg3[%c0_18, %c0_19] : memref<1x32xf32, #tpu.memory_space<vmem>>, vector<1x32xf32>
      %c0_20 = arith.constant 0 : index
      %c0_21 = arith.constant 0 : index
      %29 = vector.load %arg4[%c0_20, %c0_21] : memref<1x32xf32, #tpu.memory_space<vmem>>, vector<1x32xf32>
      %cst_22 = arith.constant dense<0.000000e+00> : vector<16xf32>
      %30 = vector.multi_reduction <add>, %27, %cst_22 [1] : vector<16x32xf32> to vector<16xf32>
      %31 = vector.shape_cast %30 : vector<16xf32> to vector<16x1xf32>
      %cst_23 = arith.constant 3.200000e+01 : f32
      %32 = vector.broadcast %cst_23 : f32 to vector<16x1xf32>
      %33 = arith.divf %31, %32 : vector<16x1xf32>
      %34 = vector.broadcast %33 : vector<16x1xf32> to vector<16x32xf32>
      %35 = arith.subf %27, %34 : vector<16x32xf32>
      %36 = arith.mulf %35, %35 : vector<16x32xf32>
      %cst_24 = arith.constant dense<0.000000e+00> : vector<16xf32>
      %37 = vector.multi_reduction <add>, %36, %cst_24 [1] : vector<16x32xf32> to vector<16xf32>
      %38 = vector.shape_cast %37 : vector<16xf32> to vector<16x1xf32>
      %cst_25 = arith.constant 3.200000e+01 : f32
      %39 = vector.broadcast %cst_25 : f32 to vector<16x1xf32>
      %40 = arith.divf %38, %39 : vector<16x1xf32>
      %cst_26 = arith.constant 9.99999974E-6 : f32
      %41 = vector.broadcast %cst_26 : f32 to vector<16x1xf32>
      %42 = arith.addf %40, %41 : vector<16x1xf32>
      %43 = math.rsqrt %42 : vector<16x1xf32>
      %44 = vector.broadcast %43 : vector<16x1xf32> to vector<16x32xf32>
      %45 = arith.mulf %35, %44 : vector<16x32xf32>
      %46 = vector.broadcast %28 : vector<1x32xf32> to vector<16x32xf32>
      %47 = arith.mulf %45, %46 : vector<16x32xf32>
      %48 = vector.broadcast %29 : vector<1x32xf32> to vector<16x32xf32>
      %49 = arith.addf %47, %48 : vector<16x32xf32>
      %c0_27 = arith.constant 0 : index
      %c0_28 = arith.constant 0 : index
      %50 = vector.load %arg12[%c0_27, %c0_28] : memref<16x32xf32, #tpu.memory_space<vmem>>, vector<16x32xf32>
      tpu.vector_store %arg12[%c0_27, %c0_28], %49 {strides = array<i32>} : memref<16x32xf32, #tpu.memory_space<vmem>>, vector<16x32xf32>,
      %c0_29 = arith.constant 0 : index
      %c0_30 = arith.constant 0 : index
      %51 = vector.load %arg7[%c0_29, %c0_30] : memref<32x16xf32, #tpu.memory_space<vmem>>, vector<32x16xf32>
      %cst_31 = arith.constant dense<0.000000e+00> : vector<16x16xf32>
      %52 = tpu.matmul %49, %51, %cst_31 {dimension_numbers = #tpu.dot_dimension_numbers<[1], [0], [0], [1], [0, 0, 1, 1], [], []>} : vector<16x32xf32>, vector<32x16xf32>, vector<16x16xf32> -> vector<16x16xf32>
      %c0_32 = arith.constant 0 : index
      %c0_33 = arith.constant 0 : index
      %53 = vector.load %arg8[%c0_32, %c0_33] : memref<1x16xf32, #tpu.memory_space<vmem>>, vector<1x16xf32>
      %54 = vector.broadcast %53 : vector<1x16xf32> to vector<16x16xf32>
      %55 = arith.addf %52, %54 : vector<16x16xf32>
      %56 = vector.extract_strided_slice %55 {offsets = [0, 0], sizes = [16, 8], strides = [1, 1]} : vector<16x16xf32> to vector<16x8xf32>
      %c0_34 = arith.constant 0 : index
      %c0_35 = arith.constant 0 : index
      %57 = vector.load %arg10[%c0_34, %c0_35] : memref<16x8xf32, #tpu.memory_space<vmem>>, vector<16x8xf32>
      tpu.vector_store %arg10[%c0_34, %c0_35], %56 {strides = array<i32>} : memref<16x8xf32, #tpu.memory_space<vmem>>, vector<16x8xf32>,
      %58 = vector.extract_strided_slice %55 {offsets = [0, 8], sizes = [16, 8], strides = [1, 1]} : vector<16x16xf32> to vector<16x8xf32>
      %c0_36 = arith.constant 0 : index
      %c0_37 = arith.constant 0 : index
      %59 = vector.load %arg11[%c0_36, %c0_37] : memref<16x8xf32, #tpu.memory_space<vmem>>, vector<16x8xf32>
      tpu.vector_store %arg11[%c0_36, %c0_37], %58 {strides = array<i32>} : memref<16x8xf32, #tpu.memory_space<vmem>>, vector<16x8xf32>,
    } else {
    }
    %c0 = arith.constant 0 : index
    %c0_1 = arith.constant 0 : index
    %3 = vector.load %arg12[%c0, %c0_1] : memref<16x32xf32, #tpu.memory_space<vmem>>, vector<16x32xf32>
    %c0_2 = arith.constant 0 : index
    %c0_3 = arith.constant 0 : index
    %4 = vector.load %arg5[%c0_2, %c0_3] : memref<32x32xf32, #tpu.memory_space<vmem>>, vector<32x32xf32>
    %cst = arith.constant dense<0.000000e+00> : vector<16x32xf32>
    %5 = tpu.matmul %3, %4, %cst {dimension_numbers = #tpu.dot_dimension_numbers<[1], [0], [0], [1], [0, 0, 1, 1], [], []>} : vector<16x32xf32>, vector<32x32xf32>, vector<16x32xf32> -> vector<16x32xf32>
    %c0_4 = arith.constant 0 : index
    %c0_5 = arith.constant 0 : index
    %6 = vector.load %arg6[%c0_4, %c0_5] : memref<1x32xf32, #tpu.memory_space<vmem>>, vector<1x32xf32>
    %7 = vector.broadcast %6 : vector<1x32xf32> to vector<16x32xf32>
    %8 = arith.addf %5, %7 : vector<16x32xf32>
    %cst_6 = arith.constant 0.353553385 : f32
    %9 = vector.broadcast %cst_6 : f32 to vector<16x32xf32>
    %10 = arith.mulf %8, %9 : vector<16x32xf32>
    %11 = vector.extract_strided_slice %10 {offsets = [0, 0], sizes = [16, 8], strides = [1, 1]} : vector<16x32xf32> to vector<16x8xf32>
    %c0_7 = arith.constant 0 : index
    %c0_8 = arith.constant 0 : index
    %c0_9 = arith.constant 0 : index
    %12 = vector.load %arg9[%c0_7, %c0_8, %c0_9] : memref<4x16x8xf32, #tpu.memory_space<vmem>>, vector<1x16x8xf32>
    %13 = vector.shape_cast %12 : vector<1x16x8xf32> to vector<16x8xf32>
    %14 = vector.shape_cast %11 : vector<16x8xf32> to vector<1x16x8xf32>
    tpu.vector_store %arg9[%c0_7, %c0_8, %c0_9], %14 {strides = array<i32>} : memref<4x16x8xf32, #tpu.memory_space<vmem>>, vector<1x16x8xf32>,
    %15 = vector.extract_strided_slice %10 {offsets = [0, 8], sizes = [16, 8], strides = [1, 1]} : vector<16x32xf32> to vector<16x8xf32>
    %c1 = arith.constant 1 : index
    %c0_10 = arith.constant 0 : index
    %c0_11 = arith.constant 0 : index
    %16 = vector.load %arg9[%c1, %c0_10, %c0_11] : memref<4x16x8xf32, #tpu.memory_space<vmem>>, vector<1x16x8xf32>
    %17 = vector.shape_cast %16 : vector<1x16x8xf32> to vector<16x8xf32>
    %18 = vector.shape_cast %15 : vector<16x8xf32> to vector<1x16x8xf32>
    tpu.vector_store %arg9[%c1, %c0_10, %c0_11], %18 {strides = array<i32>} : memref<4x16x8xf32, #tpu.memory_space<vmem>>, vector<1x16x8xf32>,
    %19 = vector.extract_strided_slice %10 {offsets = [0, 16], sizes = [16, 8], strides = [1, 1]} : vector<16x32xf32> to vector<16x8xf32>
    %c2 = arith.constant 2 : index
    %c0_12 = arith.constant 0 : index
    %c0_13 = arith.constant 0 : index
    %20 = vector.load %arg9[%c2, %c0_12, %c0_13] : memref<4x16x8xf32, #tpu.memory_space<vmem>>, vector<1x16x8xf32>
    %21 = vector.shape_cast %20 : vector<1x16x8xf32> to vector<16x8xf32>
    %22 = vector.shape_cast %19 : vector<16x8xf32> to vector<1x16x8xf32>
    tpu.vector_store %arg9[%c2, %c0_12, %c0_13], %22 {strides = array<i32>} : memref<4x16x8xf32, #tpu.memory_space<vmem>>, vector<1x16x8xf32>,
    %23 = vector.extract_strided_slice %10 {offsets = [0, 24], sizes = [16, 8], strides = [1, 1]} : vector<16x32xf32> to vector<16x8xf32>
    %c3 = arith.constant 3 : index
    %c0_14 = arith.constant 0 : index
    %c0_15 = arith.constant 0 : index
    %24 = vector.load %arg9[%c3, %c0_14, %c0_15] : memref<4x16x8xf32, #tpu.memory_space<vmem>>, vector<1x16x8xf32>
    %25 = vector.shape_cast %24 : vector<1x16x8xf32> to vector<16x8xf32>
    %26 = vector.shape_cast %23 : vector<16x8xf32> to vector<1x16x8xf32>
    tpu.vector_store %arg9[%c3, %c0_14, %c0_15], %26 {strides = array<i32>} : memref<4x16x8xf32, #tpu.memory_space<vmem>>, vector<1x16x8xf32>,
    return
  }
  func.func @transform_0(%arg0: i32, %arg1: i32) -> (i32, i32) {
    %c0_i32 = arith.constant 0 : i32
    %c0_i32_0 = arith.constant 0 : i32
    return %arg0, %c0_i32 : i32, i32
  }
  func.func @transform_1(%arg0: i32, %arg1: i32) -> (i32, i32) {
    %c0_i32 = arith.constant 0 : i32
    %c0_i32_0 = arith.constant 0 : i32
    %c0_i32_1 = arith.constant 0 : i32
    return %c0_i32, %c0_i32_0 : i32, i32
  }
  func.func @transform_2(%arg0: i32, %arg1: i32) -> (i32, i32) {
    %c0_i32 = arith.constant 0 : i32
    %c0_i32_0 = arith.constant 0 : i32
    %c0_i32_1 = arith.constant 0 : i32
    return %c0_i32, %c0_i32_0 : i32, i32
  }
  func.func @transform_3(%arg0: i32, %arg1: i32) -> (i32, i32) {
    %c0_i32 = arith.constant 0 : i32
    %c0_i32_0 = arith.constant 0 : i32
    return %c0_i32, %arg1 : i32, i32
  }
  func.func @transform_4(%arg0: i32, %arg1: i32) -> (i32, i32) {
    %c0_i32 = arith.constant 0 : i32
    %c0_i32_0 = arith.constant 0 : i32
    return %c0_i32, %arg1 : i32, i32
  }
  func.func @transform_5(%arg0: i32, %arg1: i32) -> (i32, i32) {
    %c0_i32 = arith.constant 0 : i32
    %c0_i32_0 = arith.constant 0 : i32
    %c0_i32_1 = arith.constant 0 : i32
    return %c0_i32, %c0_i32_0 : i32, i32
  }
  func.func @transform_6(%arg0: i32, %arg1: i32) -> (i32, i32) {
    %c0_i32 = arith.constant 0 : i32
    %c0_i32_0 = arith.constant 0 : i32
    %c0_i32_1 = arith.constant 0 : i32
    return %c0_i32, %c0_i32_0 : i32, i32
  }
  func.func @transform_7(%arg0: i32, %arg1: i32) -> (i32, i32, i32) {
    %c0_i32 = arith.constant 0 : i32
    %c0_i32_0 = arith.constant 0 : i32
    return %arg1, %arg0, %c0_i32 : i32, i32, i32
  }
  func.func @transform_8(%arg0: i32, %arg1: i32) -> (i32, i32) {
    %c0_i32 = arith.constant 0 : i32
    %c0_i32_0 = arith.constant 0 : i32
    return %arg0, %c0_i32 : i32, i32
  }
  func.func @transform_9(%arg0: i32, %arg1: i32) -> (i32, i32) {
    %c0_i32 = arith.constant 0 : i32
    %c0_i32_0 = arith.constant 0 : i32
    return %arg0, %c0_i32 : i32, i32
  }
}

</mosaic_0001>

<llo_original>
// kernel: tpu_custom_call.1
$region0: #{tpu_custom_call.1}
  #allocation0 [shape = 'u32[]', space=smem, size = 0x4, offset = 0x4, fixed_abs, tag = 'smem constant byte address 0x4 - core index']
  #allocation1 [shape = 'u32[72,128]{1,0:T(1,128)}', space=vmem, size = 0x9000, scoped, tag = 'internal scratch']
  #allocation2 [shape = 'f32[16,32]{1,0:T(8,128)}', space=vmem, size = 0x2000, scoped, tag = 'scratch operand']
  %s0 = inlined_call_operand.vmem [shape: f32[16,32], index: 0, kind: input, shape index: {}]
  %s1 = inlined_call_operand.vmem [shape: f32[1,32], index: 1, kind: input, shape index: {}]
  %s2 = inlined_call_operand.vmem [shape: f32[1,32], index: 2, kind: input, shape index: {}]
  %s3 = inlined_call_operand.vmem [shape: f32[32,32], index: 3, kind: input, shape index: {}]
  %s4 = inlined_call_operand.vmem [shape: f32[1,32], index: 4, kind: input, shape index: {}]
  %s5 = inlined_call_operand.vmem [shape: f32[32,16], index: 5, kind: input, shape index: {}]
  %s6 = inlined_call_operand.vmem [shape: f32[1,16], index: 6, kind: input, shape index: {}]
  %s7 = inlined_call_operand.vmem [shape: f32[4,16,8], index: 7, kind: output, shape index: {0}]
  %s8 = inlined_call_operand.vmem [shape: f32[16,8], index: 8, kind: output, shape index: {1}]
  %s9 = inlined_call_operand.vmem [shape: f32[16,8], index: 9, kind: output, shape index: {2}]
  %10 = xla_tuple %s7, %s8, %s9
  %s11 = sld [smem:[#allocation0]]
  $region58: #{tpu_custom_call.1} parent=0
    _
  %s13 = ssub.s32 1, %s11
  %s14 = scalar_select 0, %s13, %s11
  // Predicated region
  $region2: #{tpu_custom_call.1} parent=0 // pred_check
    _
  $region3: #{tpu_custom_call.1} parent=0 // pred_check_branch
    %16 = sbr.rel (0) target = $region5
  $region4: #{tpu_custom_call.1} parent=0 // pred_region
    _
  $region5: #{tpu_custom_call.1} parent=0 // pred_fallthru
    _
  // Predicated region
  $region6: #{tpu_custom_call.1} parent=0 // pred_check
    _
  $region7: #{tpu_custom_call.1} parent=0 // pred_check_branch
    %18 = sbr.rel (0) target = $region9
  $region8: #{tpu_custom_call.1} parent=0 // pred_region
    _
  $region9: #{tpu_custom_call.1} parent=0 // pred_fallthru
    _
  // Predicated region
  $region10: #{tpu_custom_call.1} parent=0 // pred_check
    _
  $region11: #{tpu_custom_call.1} parent=0 // pred_check_branch
    %20 = sbr.rel (0) target = $region13
  $region12: #{tpu_custom_call.1} parent=0 // pred_region
    _
  $region13: #{tpu_custom_call.1} parent=0 // pred_fallthru
    _
  // Predicated region
  $region14: #{tpu_custom_call.1} parent=0 // pred_check
    _
  $region15: #{tpu_custom_call.1} parent=0 // pred_check_branch
    %22 = sbr.rel (0) target = $region17
  $region16: #{tpu_custom_call.1} parent=0 // pred_region
    _
  $region17: #{tpu_custom_call.1} parent=0 // pred_fallthru
    _
  // Predicated region
  $region18: #{tpu_custom_call.1} parent=0 // pred_check
    _
  $region19: #{tpu_custom_call.1} parent=0 // pred_check_branch
    %24 = sbr.rel (0) target = $region21
  $region20: #{tpu_custom_call.1} parent=0 // pred_region
    _
  $region21: #{tpu_custom_call.1} parent=0 // pred_fallthru
    _
  // Predicated region
  $region22: #{tpu_custom_call.1} parent=0 // pred_check
    _
  $region23: #{tpu_custom_call.1} parent=0 // pred_check_branch
    %26 = sbr.rel (0) target = $region25
  $region24: #{tpu_custom_call.1} parent=0 // pred_region
    _
  $region25: #{tpu_custom_call.1} parent=0 // pred_fallthru
    _
  // Predicated region
  $region26: #{tpu_custom_call.1} parent=0 // pred_check
    _
  $region27: #{tpu_custom_call.1} parent=0 // pred_check_branch
    %28 = sbr.rel (0) target = $region29
  $region28: #{tpu_custom_call.1} parent=0 // pred_region
    _
  $region29: #{tpu_custom_call.1} parent=0 // pred_fallthru
    _
  %p29 = scmp.eq.s32.totalorder 0, 0
  // Predicated region
  $region30: #{tpu_custom_call.1} parent=0 // pred_check
    %p30 = pneg %p29
  $region31: #{tpu_custom_call.1} parent=0 // pred_check_branch
    %32 = sbr.rel (%p30) target = $region33
  $region32: #{tpu_custom_call.1} parent=0 // pred_region
    %v33 = vld [vmem:[%s0] sm:$0xff]
    %v34 = vld [vmem:[%s0 + $0x8] sm:$0xff]
    %v35 = vld [vmem:[%s1] sm:$0x1]
    %v36 = vld [vmem:[%s2] sm:$0x1]
    %vm37 = vcmask 261120
    %v38 = vsel %vm37, %v33, 0.0
    %39 = vadd.xlane.f32.xlu0 %v38
    %v40 = vpop.xlane.xlu0 %39
    %v41 = vsel %vm37, %v34, 0.0
    %42 = vadd.xlane.f32.xlu0 %v41
    %v43 = vpop.xlane.xlu0 %42
    %v44 = vrcp.pop 32.0
    %v45 = vmul.f32 32.0, %v44
    %v46 = vsub.f32 1.0, %v45
    %v47 = vmul.f32 %v44, %v46
    %v48 = vadd.f32 %v44, %v47
    %vm49 = vweird.f32 %v44
    %v50 = vsel %vm49, %v44, %v48
    %v51 = vmul.f32 %v40, %v50
    %v52 = vmul.f32 %v43, %v50
    %v53 = vsub.f32 %v33, %v51
    %v54 = vsub.f32 %v34, %v52
    %v55 = vmul.f32 %v53, %v53
    %v56 = vmul.f32 %v54, %v54
    %v57 = vsel %vm37, %v55, 0.0
    %58 = vadd.xlane.f32.xlu0 %v57
    %v59 = vpop.xlane.xlu0 %58
    %v60 = vsel %vm37, %v56, 0.0
    %61 = vadd.xlane.f32.xlu0 %v60
    %v62 = vpop.xlane.xlu0 %61
    %v63 = vmul.f32 %v59, %v50
    %v64 = vmul.f32 %v62, %v50
    %v65 = vadd.f32 %v63, 1e-05
    %v66 = vadd.f32 %v64, 1e-05
    %v67 = vrsqrt.pop %v65
    %v68 = vmul.f32 %v67, %v65
    %v69 = vmul.f32 %v68, %v67
    %v70 = vmul.f32 0.5, %v69
    %v71 = vsub.f32 1.5, %v70
    %v72 = vmul.f32 %v67, %v71
    %vm73 = vweird.f32 %v65
    %vm74 = vweird.f32 %v67
    %vm75 = vmor %vm73, %vm74
    %v76 = vsel %vm75, %v67, %v72
    %v77 = vrsqrt.pop %v66
    %v78 = vmul.f32 %v77, %v66
    %v79 = vmul.f32 %v78, %v77
    %v80 = vmul.f32 0.5, %v79
    %v81 = vsub.f32 1.5, %v80
    %v82 = vmul.f32 %v77, %v81
    %vm83 = vweird.f32 %v66
    %vm84 = vweird.f32 %v77
    %vm85 = vmor %vm83, %vm84
    %v86 = vsel %vm85, %v77, %v82
    %v87 = vmul.f32 %v53, %v76
    %v88 = vmul.f32 %v54, %v86
    %v90 = vperm.slane %v35, 0
    %v92 = vmul.f32 %v87, %v90
    %v93 = vmul.f32 %v88, %v90
    %v95 = vperm.slane %v36, 0
    %v97 = vadd.f32 %v92, %v95
    %v98 = vadd.f32 %v93, %v95
    %99 = vst.msk [vmem:[#allocation2] sm:$0xff] %vm37, %v97
    %100 = vst.msk [vmem:[#allocation2 + $0x8] sm:$0xff] %vm37, %v98
    %v101 = vld [vmem:[%s5] sm:$0xff]
    %v102 = vld [vmem:[%s5 + $0x8] sm:$0xff]
    %v103 = vld [vmem:[%s5 + $0x10] sm:$0xff]
    %v104 = vld [vmem:[%s5 + $0x18] sm:$0xff]
    %v105 = vld [vmem:[%s6] sm:$0x1]
    %v107 = vperm.slane %v105, 0
    %v110 = vsel %vm37, %v97, 0
    %v113 = vsel %vm37, %v98, 0
    %115 = vmatpush.msra.mxu0 0.0
    %116 = vmatpush.msra.mxu0 0.0
    %117 = vmatpush.msra.mxu0 0.0
    %118 = vmatpush.msra.mxu0 0.0
    %119 = vmatpush.msra.mxu0 0.0
    %120 = vmatpush.msra.mxu0 0.0
    %121 = vmatpush.msra.mxu0 0.0
    %122 = vmatpush.msra.mxu0 0.0
    %123 = vmatpush.msra.mxu0 0.0
    %124 = vmatpush.msra.mxu0 0.0
    %125 = vmatpush.msra.mxu0 0.0
    %126 = vmatpush.msra.mxu0 0.0
    %127 = vmatpush.msra.mxu0 %v104
    %128 = vmatpush.msra.mxu0 %v103
    %129 = vmatpush.msra.mxu0 %v102
    %130 = vmatpush.msra.mxu0 %v101
    %131 = vmatmul.f32.gmra.mxu0 %v110
    %v132 = vpop.f32.mrf.mxu0
    %v133 = vadd.f32 %v107, %v132
    %134 = vmatmul.f32.gmra.mxu0 %v113
    %v135 = vpop.f32.mrf.mxu0
    %v136 = vadd.f32 %v107, %v135
    %137 = vdwg.mxu0
    %vm138 = vcmask 64512
    %139 = vst.msk [vmem:[%s8] sm:$0xff] %vm138, %v133
    %140 = vst.msk [vmem:[%s8 + $0x8] sm:$0xff] %vm138, %v136
    %143 = vrot.lane.b32.xlu0 %v133, 120
    %v144 = vpop.permute.xlu0 %143
    %145 = vrot.lane.b32.xlu0 %v136, 120
    %v146 = vpop.permute.xlu0 %145
    %149 = vst.msk [vmem:[%s9] sm:$0xff] %vm138, %v144
    %150 = vst.msk [vmem:[%s9 + $0x8] sm:$0xff] %vm138, %v146
  $region33: #{tpu_custom_call.1} parent=0 // pred_fallthru
    _
  %v151 = vld [vmem:[#allocation2] sm:$0xff]
  %v152 = vld [vmem:[#allocation2 + $0x8] sm:$0xff]
  %v153 = vld [vmem:[%s3] sm:$0xff]
  %v154 = vld [vmem:[%s3 + $0x8] sm:$0xff]
  %v155 = vld [vmem:[%s3 + $0x10] sm:$0xff]
  %v156 = vld [vmem:[%s3 + $0x18] sm:$0xff]
  %v157 = vld [vmem:[%s4] sm:$0x1]
  %v159 = vperm.slane %v157, 0
  %vm161 = vcmask 261120
  %v163 = vsel %vm161, %v151, 0
  %v166 = vsel %vm161, %v152, 0
  %168 = vmatpush.msra.mxu0 0.0
  %169 = vmatpush.msra.mxu0 0.0
  %170 = vmatpush.msra.mxu0 0.0
  %171 = vmatpush.msra.mxu0 0.0
  %172 = vmatpush.msra.mxu0 0.0
  %173 = vmatpush.msra.mxu0 0.0
  %174 = vmatpush.msra.mxu0 0.0
  %175 = vmatpush.msra.mxu0 0.0
  %176 = vmatpush.msra.mxu0 0.0
  %177 = vmatpush.msra.mxu0 0.0
  %178 = vmatpush.msra.mxu0 0.0
  %179 = vmatpush.msra.mxu0 0.0
  %180 = vmatpush.msra.mxu0 %v156
  %181 = vmatpush.msra.mxu0 %v155
  %182 = vmatpush.msra.mxu0 %v154
  %183 = vmatpush.msra.mxu0 %v153
  %184 = vmatmul.f32.gmra.mxu0 %v163
  %v185 = vpop.f32.mrf.mxu0
  %v186 = vadd.f32 %v159, %v185
  %187 = vmatmul.f32.gmra.mxu0 %v166
  %v188 = vpop.f32.mrf.mxu0
  %v189 = vadd.f32 %v159, %v188
  %190 = vdwg.mxu0
  %v191 = vmul.f32 %v186, 0.35355338
  %v192 = vmul.f32 %v189, 0.35355338
  %vm193 = vcmask 64512
  %194 = vst.msk [vmem:[%s7] sm:$0xff] %vm193, %v191
  %195 = vst.msk [vmem:[%s7 + $0x8] sm:$0xff] %vm193, %v192
  %198 = vrot.lane.b32.xlu0 %v191, 120
  %v199 = vpop.permute.xlu0 %198
  %200 = vrot.lane.b32.xlu0 %v192, 120
  %v201 = vpop.permute.xlu0 %200
  %s204 = scalar_lea.vmem %s7, 16
  %205 = vst.msk [vmem:[%s204] sm:$0xff] %vm193, %v199
  %206 = vst.msk [vmem:[%s204 + $0x8] sm:$0xff] %vm193, %v201
  %207 = vrot.lane.b32.xlu0 %v191, 112
  %v208 = vpop.permute.xlu0 %207
  %209 = vrot.lane.b32.xlu0 %v192, 112
  %v210 = vpop.permute.xlu0 %209
  %s213 = scalar_lea.vmem %s7, 32
  %214 = vst.msk [vmem:[%s213] sm:$0xff] %vm193, %v208
  %215 = vst.msk [vmem:[%s213 + $0x8] sm:$0xff] %vm193, %v210
  %216 = vrot.lane.b32.xlu0 %v191, 104
  %v217 = vpop.permute.xlu0 %216
  %218 = vrot.lane.b32.xlu0 %v192, 104
  %v219 = vpop.permute.xlu0 %218
  %s222 = scalar_lea.vmem %s7, 48
  %223 = vst.msk [vmem:[%s222] sm:$0xff] %vm193, %v217
  %224 = vst.msk [vmem:[%s222 + $0x8] sm:$0xff] %vm193, %v219
  // Predicated region
  $region34: #{tpu_custom_call.1} parent=0 // pred_check
    _
  $region35: #{tpu_custom_call.1} parent=0 // pred_check_branch
    %226 = sbr.rel (0) target = $region37
  $region36: #{tpu_custom_call.1} parent=0 // pred_region
    _
  $region37: #{tpu_custom_call.1} parent=0 // pred_fallthru
    _
  // Predicated region
  $region38: #{tpu_custom_call.1} parent=0 // pred_check
    _
  $region39: #{tpu_custom_call.1} parent=0 // pred_check_branch
    %228 = sbr.rel (0) target = $region41
  $region40: #{tpu_custom_call.1} parent=0 // pred_region
    _
  $region41: #{tpu_custom_call.1} parent=0 // pred_fallthru
    _
  // Predicated region
  $region42: #{tpu_custom_call.1} parent=0 // pred_check
    _
  $region43: #{tpu_custom_call.1} parent=0 // pred_check_branch
    %230 = sbr.rel (0) target = $region45
  $region44: #{tpu_custom_call.1} parent=0 // pred_region
    _
  $region45: #{tpu_custom_call.1} parent=0 // pred_fallthru
    _
  // Predicated region
  $region46: #{tpu_custom_call.1} parent=0 // pred_check
    _
  $region47: #{tpu_custom_call.1} parent=0 // pred_check_branch
    %232 = sbr.rel (0) target = $region49
  $region48: #{tpu_custom_call.1} parent=0 // pred_region
    _
  $region49: #{tpu_custom_call.1} parent=0 // pred_fallthru
    _
  // Predicated region
  $region50: #{tpu_custom_call.1} parent=0 // pred_check
    _
  $region51: #{tpu_custom_call.1} parent=0 // pred_check_branch
    %234 = sbr.rel (0) target = $region53
  $region52: #{tpu_custom_call.1} parent=0 // pred_region
    _
  $region53: #{tpu_custom_call.1} parent=0 // pred_fallthru
    _
  // Predicated region
  $region54: #{tpu_custom_call.1} parent=0 // pred_check
    _
  $region55: #{tpu_custom_call.1} parent=0 // pred_check_branch
    %236 = sbr.rel (0) target = $region57
  $region56: #{tpu_custom_call.1} parent=0 // pred_region
    _
  $region57: #{tpu_custom_call.1} parent=0 // pred_fallthru
    _

</llo_original>
